<compile_context>
chip_gen: v6e
topology: v6e:2x2x1
jax: 0.10.0
libtpu: 0.0.40
codegen_flags: <defaults>
</compile_context>

<pallas_src>
import functools
import math

import jax
import jax.numpy as jnp
import numpy as np
from jax.experimental import pallas as pl
from jax.experimental.pallas import tpu as pltpu

_MIB = 1024 * 1024


def _shift3d_kernel(x_ref, o_ref, *, sh, sw, lane_roll_2d):
    """Left-roll the (H, W) planes of a (nc_blk, d_blk, H, W) block by (sh, sw).

    The D roll is handled entirely by the input BlockSpec index_map, so the
    kernel only rolls the sublane (H) and lane (W) axes -- as whole-block
    operations (no per-vreg loop).
    """
    nc, db, H, W = x_ref.shape
    v = x_ref[...]

    if sw:
        if lane_roll_2d:
            # Collapsing the leading dims (nc, db, H) -> nc*db*H is layout-free
            # when H is a multiple of the packed sublane count, so the whole
            # block is rolled with a single XLU lane rotate.
            flat = v.reshape(nc * db * H, W)
            flat = pltpu.roll(flat, shift=W - sw, axis=1)   # left roll by sw
            v = flat.reshape(nc, db, H, W)
        else:
            # Layout-unfriendly H: whole-block static two-slice concat instead
            # of forcing an in-kernel relayout.
            v = jnp.concatenate([v[..., sw:], v[..., :sw]], axis=-1)

    if sh:
        # Sublane (H) roll as a whole-block static two-slice concat; the final
        # full-block store below stays unmasked / lane-dense.
        v = jnp.concatenate([v[..., sh:, :], v[..., :sh, :]], axis=-2)

    o_ref[...] = v


def _default_block_bytes():
    # 4 resident buffers (input + output, each double-buffered) x 3.5 MiB
    # = 14 MiB: fits v5e's 16 MiB scoped-VMEM default (v6e/v7x default 32 MiB)
    # with headroom, and is well past the ~1 MiB point where tiled-copy
    # throughput saturates.  On v7x-class parts (64 MiB physical VMEM, 32 MiB
    # scoped per TC) allow somewhat bigger slabs.
    budget = int(3.5 * _MIB)
    try:
        info = pltpu.get_tpu_info()
        vmem = getattr(info, "vmem_capacity_bytes", None)
        if vmem is not None and vmem < 96 * _MIB:
            budget = 6 * _MIB
    except Exception:
        pass
    return budget


def _divisors(n):
    return [i for i in range(1, n + 1) if n % i == 0]


def _pick_block(NC, D, g, plane_bytes, budget):
    """Largest (nc_blk, d_blk) divisor pair with nc*db*plane_bytes <= budget,
    preferring grids with >= 2 steps (so megacore/"parallel" sharding helps)."""
    best = None        # within budget, >= 2 grid steps
    best_any = None    # within budget, any step count
    smallest = None    # absolute fallback if nothing fits the budget
    for nc in _divisors(NC):
        for db in _divisors(g):
            blk = nc * db * plane_bytes
            steps = (NC // nc) * (D // db)
            if smallest is None or blk < smallest[0]:
                smallest = (blk, nc, db)
            if blk > budget:
                continue
            if best_any is None or blk > best_any[0]:
                best_any = (blk, nc, db)
            if steps >= 2 and (best is None or blk > best[0]):
                best = (blk, nc, db)
    _, nc_blk, d_blk = best or best_any or smallest
    return nc_blk, d_blk


def shift3d(x, shift, *, block_bytes=None):
    """Pallas equivalent of Shift3D.forward(x, shift).

    x: (N, C, D, H, W) array.  shift: sequence of 3 static Python ints.
    out[n,c,d,h,w] = x[n,c,(d+shift[0])%D,(h+shift[1])%H,(w+shift[2])%W]
    """
    N, C, D, H, W = x.shape
    sd = int(shift[0]) % D
    sh = int(shift[1]) % H
    sw = int(shift[2]) % W

    if sd == 0 and sh == 0 and sw == 0:
        return x                                  # identity: no pallas_call

    if block_bytes is None:
        block_bytes = _default_block_bytes()

    NC = N * C
    xr = x.reshape(NC, D, H, W)                   # merging leading dims is free

    itemsize = jnp.dtype(x.dtype).itemsize
    plane_bytes = H * W * itemsize

    # D blocks must never wrap internally: d_blk | gcd(D, sd) (sd==0 -> any
    # divisor of D), so the D roll stays pure DMA addressing in block units.
    g = D if sd == 0 else math.gcd(D, sd)
    nc_blk, d_blk = _pick_block(NC, D, g, plane_bytes, block_bytes)

    # Packed sublane count per dtype (8 f32 / 16 bf16 / 32 int8): the in-kernel
    # (nc*db*H, W) flatten used for the single-roll lane path is only free when
    # H is aligned to it; otherwise fall back to the two-slice concat.
    packed_sublanes = max(1, 32 // itemsize)
    lane_roll_2d = (H % packed_sublanes == 0)

    kernel = functools.partial(
        _shift3d_kernel, sh=sh, sw=sw, lane_roll_2d=lane_roll_2d)

    d_shift_blocks = sd // d_blk                  # integer: d_blk | sd
    n_d_blocks = D // d_blk

    in_spec = pl.BlockSpec(
        (nc_blk, d_blk, H, W),
        lambda b, d: (b, (d + d_shift_blocks) % n_d_blocks, 0, 0))
    out_spec = pl.BlockSpec(
        (nc_blk, d_blk, H, W),
        lambda b, d: (b, d, 0, 0))

    out = pl.pallas_call(
        kernel,
        out_shape=jax.ShapeDtypeStruct((NC, D, H, W), x.dtype),
        grid_spec=pltpu.PrefetchScalarGridSpec(
            num_scalar_prefetch=0,
            grid=(NC // nc_blk, n_d_blocks),
            in_specs=[in_spec],
            out_specs=out_spec,
        ),
        compiler_params=pltpu.CompilerParams(
            dimension_semantics=("parallel", "parallel")),
        cost_estimate=pl.CostEstimate(
            flops=0, transcendentals=0,
            bytes_accessed=2 * x.size * itemsize),
    )(xr)

    return out.reshape(N, C, D, H, W)


if __name__ == "__main__":
    key = jax.random.PRNGKey(0)
    # Small NCDHW input: N=2, C=3, D=4, H=8, W=128 (W lane-dense, H f32-aligned).
    x = jax.random.normal(key, (2, 3, 4, 8, 128), dtype=jnp.float32)

    def ref(x, s):
        return jnp.roll(x, shift=(-s[0], -s[1], -s[2]), axis=(2, 3, 4))

    cases = [
        (1, 3, 5),    # all three axes roll; gcd(D, sd)=1 -> d_blk=1
        (3, 0, 64),   # zero H shift, half-width lane roll
        (2, 0, 0),    # pure D roll: kernel is a straight copy, roll in index_map
        (0, 5, 0),    # sublane-only roll, D fully folded into the block
        (0, 0, 0),    # identity fast path (no pallas_call)
    ]
    for s in cases:
        out = jax.block_until_ready(shift3d(x, s))
        np.testing.assert_allclose(np.asarray(out), np.asarray(ref(x, s)),
                                   rtol=0, atol=0)

    print("KERNEL_OK")
</pallas_src>

<mosaic_0001>
module attributes {stable_mosaic.version = 11 : i64} {
  func.func @_shift3d_kernel(%arg0: i32, %arg1: i32, %arg2: memref<6x1x8x128xf32, #tpu.memory_space<vmem>>, %arg3: memref<6x1x8x128xf32, #tpu.memory_space<vmem>>) attributes {dimension_semantics = [#tpu.dimension_semantics<parallel>, #tpu.dimension_semantics<parallel>], iteration_bounds = array<i64: 1, 4>, scalar_prefetch = 0 : i64, scratch_operands = 0 : i64, tpu.core_type = #tpu.core_type<tc>, window_params = [{transform_indices = @transform_0, window_bounds = array<i64: 6, 1, 8, 128>}, {transform_indices = @transform_1, window_bounds = array<i64: 6, 1, 8, 128>}]} {
    %c0 = arith.constant 0 : index
    %c0_0 = arith.constant 0 : index
    %c0_1 = arith.constant 0 : index
    %c0_2 = arith.constant 0 : index
    %0 = vector.load %arg2[%c0, %c0_0, %c0_1, %c0_2] : memref<6x1x8x128xf32, #tpu.memory_space<vmem>>, vector<6x1x8x128xf32>
    %1 = vector.shape_cast %0 : vector<6x1x8x128xf32> to vector<48x128xf32>
    %c123_i32 = arith.constant 123 : i32
    %2 = tpu.dynamic_rotate %1 by %c123_i32 dim 1 : vector<48x128xf32>, i32 -> vector<48x128xf32>
    %3 = vector.shape_cast %2 : vector<48x128xf32> to vector<6x1x8x128xf32>
    %4 = vector.extract_strided_slice %3 {offsets = [0, 0, 3, 0], sizes = [6, 1, 5, 128], strides = [1, 1, 1, 1]} : vector<6x1x8x128xf32> to vector<6x1x5x128xf32>
    %5 = vector.extract_strided_slice %3 {offsets = [0, 0, 0, 0], sizes = [6, 1, 3, 128], strides = [1, 1, 1, 1]} : vector<6x1x8x128xf32> to vector<6x1x3x128xf32>
    %6 = tpu.concatenate %4, %5 in 2 : vector<6x1x5x128xf32>, vector<6x1x3x128xf32> -> vector<6x1x8x128xf32>
    %c0_3 = arith.constant 0 : index
    %c0_4 = arith.constant 0 : index
    %c0_5 = arith.constant 0 : index
    %c0_6 = arith.constant 0 : index
    %7 = vector.load %arg3[%c0_3, %c0_4, %c0_5, %c0_6] : memref<6x1x8x128xf32, #tpu.memory_space<vmem>>, vector<6x1x8x128xf32>
    tpu.vector_store %arg3[%c0_3, %c0_4, %c0_5, %c0_6], %6 {strides = array<i32>} : memref<6x1x8x128xf32, #tpu.memory_space<vmem>>, vector<6x1x8x128xf32>,
    return
  }
  func.func @transform_0(%arg0: i32, %arg1: i32) -> (i32, i32, i32, i32) {
    %c1_i32 = arith.constant 1 : i32
    %0 = arith.addi %arg1, %c1_i32 : i32
    %c4_i32 = arith.constant 4 : i32
    %c0_i32 = arith.constant 0 : i32
    %1 = arith.cmpi eq, %c4_i32, %c0_i32 : i32
    %c1_i32_0 = arith.constant 1 : i32
    %2 = arith.select %1, %c1_i32_0, %c4_i32 : i32
    %3 = arith.remsi %0, %2 : i32
    %c0_i32_1 = arith.constant 0 : i32
    %4 = arith.cmpi ne, %3, %c0_i32_1 : i32
    %c0_i32_2 = arith.constant 0 : i32
    %5 = arith.cmpi slt, %3, %c0_i32_2 : i32
    %c0_i32_3 = arith.constant 0 : i32
    %6 = arith.cmpi slt, %2, %c0_i32_3 : i32
    %7 = arith.xori %5, %6 : i1
    %8 = arith.andi %7, %4 : i1
    %9 = arith.addi %3, %2 : i32
    %10 = arith.select %8, %9, %3 : i32
    %c0_i32_4 = arith.constant 0 : i32
    %c0_i32_5 = arith.constant 0 : i32
    %c0_i32_6 = arith.constant 0 : i32
    return %arg0, %10, %c0_i32_4, %c0_i32_5 : i32, i32, i32, i32
  }
  func.func @transform_1(%arg0: i32, %arg1: i32) -> (i32, i32, i32, i32) {
    %c0_i32 = arith.constant 0 : i32
    %c0_i32_0 = arith.constant 0 : i32
    %c0_i32_1 = arith.constant 0 : i32
    return %arg0, %arg1, %c0_i32, %c0_i32_0 : i32, i32, i32, i32
  }
}

</mosaic_0001>

<llo_original>
// kernel: tpu_custom_call.1
$region0: #{tpu_custom_call.1}
  #allocation0 [shape = 'u32[]', space=smem, size = 0x4, offset = 0x4, fixed_abs, tag = 'smem constant byte address 0x4 - core index']
  #allocation1 [shape = 'u32[144,128]{1,0:T(1,128)}', space=vmem, size = 0x12000, scoped, tag = 'internal scratch']
  %s0 = inlined_call_operand.hbm [shape: f32[6,4,8,128], index: 0, kind: input, shape index: {}]
  %s1 = inlined_call_operand.hbm [shape: f32[6,4,8,128], index: 1, kind: output, shape index: {}]
  %s2 = sld [smem:[#allocation0]]
  $region41: #{tpu_custom_call.1} parent=0
    _
  %s4 = ssub.s32 1, %s2
  %s5 = scalar_select 0, %s4, %s2
  $region1: #{tpu_custom_call.1} parent=0
    #allocation2 [shape = 'u8[49152]{0}', space=vmem, size = 0xc000, scoped, tag = 'input window, operand 0']
    #allocation3 [shape = 's32[2]{0}', space=sflag, size = 0x8, scoped, tag = 'scoped memory for tpu_custom_call.1']
    #allocation4 [shape = 's32[2]{0}', space=sflag, size = 0x8, scoped, tag = 'scoped memory for tpu_custom_call.1']
    #allocation5 [shape = 'u8[49152]{0}', space=vmem, size = 0xc000, scoped, tag = 'output window, operand 0']
    %6 = vsyncpa [#allocation3], 0
    %s7 = scalar_lea.sflag [#allocation3], 1
    %8 = vsyncpa %s7, 0
    %9 = vsyncpa [#allocation4], 0
    %s10 = scalar_lea.sflag [#allocation4], 1
    %11 = vsyncpa %s10, 0
    loop: start=0, step=1, limit=6
    $region2: #{tpu_custom_call.1} parent=1 // loop_pre_header
      _
    $region3: #{tpu_custom_call.1} parent=1 // loop_header
      %s13 = sphi 0, %s17
      %p14 = scmp.ge.s32.totalorder %s13, 6
      %s20 = sphi 0, %s32
      %s21 = sphi 0, %s28
      %s22 = sphi 0, %s20
      %s23 = sphi 0, %s21
      %s24 = sphi 0, %s22
      %s25 = sphi 0, %s23
      %s63 = sphi 0, %s65
      %s66 = sphi 0, %s63
      %s67 = sphi 0, %s66
      %s83 = sphi 0, %s67
      %s91 = sphi 0, %s93
      %s94 = sphi 0, %s91
      %s95 = sphi 0, %s94
      %s111 = sphi 0, %s95
    $region4: #{tpu_custom_call.1} parent=1 // loop_header_branch
      %16 = sbr.rel (%p14) target = $region8
    $region5: #{tpu_custom_call.1} parent=1 // loop_body
      %s18 = ssub.s32 %s13, 1
      %s19 = ssub.s32 %s13, 2
      %s26 = sadd.s32 1, %s21
      %p27 = scmp.ge.s32.totalorder %s26, 4
      %s28 = scalar_select %p27, 0, %s26
      %s29 = sadd.s32 1, %s20
      %s30 = scalar_select %p27, %s29, %s20
      %p31 = scmp.ge.s32.totalorder %s30, 1
      %s32 = scalar_select %p31, 0, %s30
      %s33 = sadd.s32 %s21, 1
      %p34 = scmp.lt.s32.totalorder %s33, 0
      %s35 = ssub.s32 0, %s33
      %s36 = scalar_select %p34, %s35, %s33
      %s37 = sand.u32 %s36, 3
      %s38 = ssub.s32 0, %s37
      %s39 = scalar_select %p34, %s38, %s37
      %p40 = scmp.ne.s32.totalorder %s39, 0
      %p41 = scmp.lt.s32.totalorder %s39, 0
      %p42 = pnand %p41, %p40
      %p43 = pneg %p42
      %s44 = sadd.s32 %s39, 4
      %s45 = scalar_select %p43, %s44, %s39
      %s46 = sadd.s32 %s28, 1
      %p47 = scmp.lt.s32.totalorder %s46, 0
      %s48 = ssub.s32 0, %s46
      %s49 = scalar_select %p47, %s48, %s46
      %s50 = sand.u32 %s49, 3
      %s51 = ssub.s32 0, %s50
      %s52 = scalar_select %p47, %s51, %s50
      %p53 = scmp.ne.s32.totalorder %s52, 0
      %p54 = scmp.lt.s32.totalorder %s52, 0
      %p55 = pnand %p54, %p53
      %p56 = pneg %p55
      %s57 = sadd.s32 %s52, 4
      %s58 = scalar_select %p56, %s57, %s52
      %s59 = ssub.s32 %s20, %s32
      %s60 = ssub.s32 %s45, %s58
      %s61 = sor.u32 %s59, %s60
      %p62 = scmp.eq.s32.totalorder %s61, 0
      %s64 = sadd.s32 %s63, 1
      %s65 = scalar_select %p62, %s63, %s64
      %p68 = pneg %p62
      %p69 = scmp.eq.s32.totalorder %s13, 3
      %p70 = por %p68, %p69
      %p71 = scmp.ne.s32.totalorder %s63, %s66
      %p72 = scmp.eq.s32.totalorder %s13, 0
      %p73 = por %p71, %p72
      %p74 = scmp.ne.s32.totalorder %s63, %s66
      %p75 = scmp.eq.s32.totalorder %s18, 3
      %p76 = por %p74, %p75
      %p77 = scmp.ne.s32.totalorder %s66, %s67
      %p78 = scmp.eq.s32.totalorder %s18, 0
      %p79 = por %p77, %p78
      %p80 = scmp.ne.s32.totalorder %s66, %s67
      %p81 = scmp.eq.s32.totalorder %s19, 3
      %p82 = por %p80, %p81
      %p84 = scmp.ne.s32.totalorder %s67, %s83
      %p85 = scmp.eq.s32.totalorder %s19, 0
      %p86 = por %p84, %p85
      %s87 = ssub.s32 %s20, %s32
      %s88 = ssub.s32 %s21, %s28
      %s89 = sor.u32 %s87, %s88
      %p90 = scmp.eq.s32.totalorder %s89, 0
      %s92 = sadd.s32 %s91, 1
      %s93 = scalar_select %p90, %s91, %s92
      %p96 = pneg %p90
      %p97 = scmp.eq.s32.totalorder %s13, 3
      %p98 = por %p96, %p97
      %p99 = scmp.ne.s32.totalorder %s91, %s94
      %p100 = scmp.eq.s32.totalorder %s13, 0
      %p101 = por %p99, %p100
      %p102 = scmp.ne.s32.totalorder %s91, %s94
      %p103 = scmp.eq.s32.totalorder %s18, 3
      %p104 = por %p102, %p103
      %p105 = scmp.ne.s32.totalorder %s94, %s95
      %p106 = scmp.eq.s32.totalorder %s18, 0
      %p107 = por %p105, %p106
      %p108 = scmp.ne.s32.totalorder %s94, %s95
      %p109 = scmp.eq.s32.totalorder %s19, 3
      %p110 = por %p108, %p109
      %p112 = scmp.ne.s32.totalorder %s95, %s111
      %p113 = scmp.eq.s32.totalorder %s19, 0
      %p114 = por %p112, %p113
      %p115 = scmp.le.s32.totalorder 1, %s13
      %p116 = scmp.lt.s32.totalorder %s13, 5
      %p117 = pnand %p115, %p116
      %p118 = pneg %p117
      // Predicated region
      $region9: #{tpu_custom_call.1} parent=5 // pred_check
        _
      $region10: #{tpu_custom_call.1} parent=5 // pred_check_branch
        %120 = sbr.rel (%p117) target = $region12
      $region11: #{tpu_custom_call.1} parent=5 // pred_region
        %s121 = ssub.s32 %s13, 1
      $region12: #{tpu_custom_call.1} parent=5 // pred_fallthru
        _
      %p122 = scmp.lt.s32.totalorder %s13, 4
      // Predicated region
      $region13: #{tpu_custom_call.1} parent=5 // pred_check
        %p123 = pneg %p122
      $region14: #{tpu_custom_call.1} parent=5 // pred_check_branch
        %125 = sbr.rel (%p123) target = $region16
      $region15: #{tpu_custom_call.1} parent=5 // pred_region
        // Predicated region
        $region17: #{tpu_custom_call.1} parent=15 // pred_check
          %p126 = pneg %p73
        $region18: #{tpu_custom_call.1} parent=15 // pred_check_branch
          %128 = sbr.rel (%p126) target = $region20
        $region19: #{tpu_custom_call.1} parent=15 // pred_region
          %s129 = sand.u32 %s63, 1
          %s130 = scalar_lea.sflag [#allocation3], %s129
          %s131 = sand.u32 %s63, 1
          %s132 = smul.addr %s131, 48
          %s133 = scalar_lea.vmem [#allocation2], %s132
          %s134 = sadd.s32 %s21, 1
          %p135 = scmp.lt.s32.totalorder %s134, 0
          %s136 = ssub.s32 0, %s134
          %s137 = scalar_select %p135, %s136, %s134
          %s138 = sand.u32 %s137, 3
          %s139 = ssub.s32 0, %s138
          %s140 = scalar_select %p135, %s139, %s138
          %p141 = scmp.ne.s32.totalorder %s140, 0
          %p142 = scmp.lt.s32.totalorder %s140, 0
          %p143 = pnand %p142, %p141
          %p144 = pneg %p143
          %s145 = sadd.s32 %s140, 4
          %s146 = scalar_select %p144, %s145, %s140
          %s147 = smul.u32 6, %s20
          %s149 = ssub.s32 768, 768
          %150 = vsyncadd %s130, %s149
          %s151 = smul.addr %s147, 4
          %s152 = sadd.s32 %s146, %s151
          %s153 = smul.addr %s152, 128
          %s154 = scalar_lea.hbm %s0, %s153
          %s155 = sshll.u32 %s133, 4
          %s156 = int_to_ptr.vmem [resolvable:$true] %s155
          %161 = dma.hbm_to_vmem [thread:$0]  %s154, 768, %s156, %s130, 512, 128, 8
        $region20: #{tpu_custom_call.1} parent=15 // pred_fallthru
          _
      $region16: #{tpu_custom_call.1} parent=5 // pred_fallthru
        _
      %p162 = scmp.le.s32.totalorder 1, %s13
      %p163 = scmp.lt.s32.totalorder %s13, 5
      %p164 = pnand %p162, %p163
      %p165 = pneg %p164
      // Predicated region
      $region21: #{tpu_custom_call.1} parent=5 // pred_check
        _
      $region22: #{tpu_custom_call.1} parent=5 // pred_check_branch
        %167 = sbr.rel (%p164) target = $region24
      $region23: #{tpu_custom_call.1} parent=5 // pred_region
        %s168 = ssub.s32 %s13, 1
        %s169 = sand.u32 %s66, 1
        %s170 = scalar_lea.sflag [#allocation3], %s169
        %s171 = sand.u32 %s66, 1
        %s172 = smul.addr %s171, 48
        %s173 = scalar_lea.vmem [#allocation2], %s172
        // Predicated region
        $region25: #{tpu_custom_call.1} parent=23 // pred_check
          %p174 = pneg %p79
        $region26: #{tpu_custom_call.1} parent=23 // pred_check_branch
          %176 = sbr.rel (%p174) target = $region28
        $region27: #{tpu_custom_call.1} parent=23 // pred_region
          %177 = dma.done %s170, 768
        $region28: #{tpu_custom_call.1} parent=23 // pred_fallthru
          _
        %s178 = sand.u32 %s66, 1
        %s179 = scalar_lea.sflag [#allocation3], %s178
        %s180 = sand.u32 %s66, 1
        %s181 = smul.addr %s180, 48
        %s182 = scalar_lea.vmem [#allocation2], %s181
        %p183 = pneg %p79
        %p184 = pneg %p76
        %p185 = pneg %p107
        %p186 = pneg %p104
        %s187 = sand.u32 %s94, 1
        %s188 = scalar_lea.sflag [#allocation4], %s187
        %s189 = sand.u32 %s94, 1
        %s190 = smul.addr %s189, 48
        %s191 = scalar_lea.vmem [#allocation5], %s190
        %s192 = sadd.s32 %s23, 1
        %p193 = scmp.lt.s32.totalorder %s192, 0
        %s194 = ssub.s32 0, %s192
        %s195 = scalar_select %p193, %s194, %s192
        %s196 = sand.u32 %s195, 3
        %s197 = ssub.s32 0, %s196
        %s198 = scalar_select %p193, %s197, %s196
        %p199 = scmp.ne.s32.totalorder %s198, 0
        %p200 = scmp.lt.s32.totalorder %s198, 0
        %p201 = pnand %p200, %p199
        %p202 = pneg %p201
        %s203 = sadd.s32 %s198, 4
        %s204 = scalar_select %p202, %s203, %s198
        %s205 = smul.u32 6, %s22
        %s206 = smul.u32 6, %s22
        %v207 = vld [vmem:[%s173] sm:$0xff]
        %v208 = vld [vmem:[%s173 + $0x8] sm:$0xff]
        %v209 = vld [vmem:[%s173 + $0x10] sm:$0xff]
        %v210 = vld [vmem:[%s173 + $0x18] sm:$0xff]
        %v211 = vld [vmem:[%s173 + $0x20] sm:$0xff]
        %v212 = vld [vmem:[%s173 + $0x28] sm:$0xff]
        %213 = vrot.lane.b32.xlu0 %v207, 123
        %v214 = vpop.permute.xlu0 %213
        %215 = vrot.lane.b32.xlu0 %v208, 123
        %v216 = vpop.permute.xlu0 %215
        %217 = vrot.lane.b32.xlu0 %v209, 123
        %v218 = vpop.permute.xlu0 %217
        %219 = vrot.lane.b32.xlu0 %v210, 123
        %v220 = vpop.permute.xlu0 %219
        %221 = vrot.lane.b32.xlu0 %v211, 123
        %v222 = vpop.permute.xlu0 %221
        %223 = vrot.lane.b32.xlu0 %v212, 123
        %v224 = vpop.permute.xlu0 %223
        %v231 = vrot.slane %v214, 3
        %v232 = vrot.slane %v216, 3
        %v233 = vrot.slane %v218, 3
        %v234 = vrot.slane %v220, 3
        %v235 = vrot.slane %v222, 3
        %v236 = vrot.slane %v224, 3
        %vm243 = vcmask 1044480
        %v244 = vsel %vm243, %v231, %v231
        %v245 = vsel %vm243, %v232, %v232
        %v246 = vsel %vm243, %v233, %v233
        %v247 = vsel %vm243, %v234, %v234
        %v248 = vsel %vm243, %v235, %v235
        %v249 = vsel %vm243, %v236, %v236
        %250 = vst [vmem:[%s191] sm:$0xff] %v244
        %251 = vst [vmem:[%s191 + $0x8] sm:$0xff] %v245
        %252 = vst [vmem:[%s191 + $0x10] sm:$0xff] %v246
        %253 = vst [vmem:[%s191 + $0x18] sm:$0xff] %v247
        %254 = vst [vmem:[%s191 + $0x20] sm:$0xff] %v248
        %255 = vst [vmem:[%s191 + $0x28] sm:$0xff] %v249
        %s256 = sand.u32 %s94, 1
        %s257 = scalar_lea.sflag [#allocation4], %s256
        %s258 = sand.u32 %s94, 1
        %s259 = smul.addr %s258, 48
        %s260 = scalar_lea.vmem [#allocation5], %s259
        // Predicated region
        $region29: #{tpu_custom_call.1} parent=23 // pred_check
          %p261 = pneg %p104
        $region30: #{tpu_custom_call.1} parent=23 // pred_check_branch
          %263 = sbr.rel (%p261) target = $region32
        $region31: #{tpu_custom_call.1} parent=23 // pred_region
          %s264 = smul.u32 6, %s22
          %s266 = ssub.s32 768, 768
          %267 = vsyncadd %s257, %s266
          %s268 = smul.addr %s264, 4
          %s269 = sadd.s32 %s23, %s268
          %s270 = smul.addr %s269, 128
          %s271 = scalar_lea.hbm %s1, %s270
          %s272 = sshll.u32 %s260, 4
          %s273 = int_to_ptr.vmem [resolvable:$true] %s272
          %278 = dma.vmem_to_hbm [thread:$0]  %s273, 768, %s271, %s257, 128, 512, 8
        $region32: #{tpu_custom_call.1} parent=23 // pred_fallthru
          _
      $region24: #{tpu_custom_call.1} parent=5 // pred_fallthru
        _
      %p279 = scmp.le.s32.totalorder 2, %s13
      // Predicated region
      $region33: #{tpu_custom_call.1} parent=5 // pred_check
        %p280 = pneg %p279
      $region34: #{tpu_custom_call.1} parent=5 // pred_check_branch
        %282 = sbr.rel (%p280) target = $region36
      $region35: #{tpu_custom_call.1} parent=5 // pred_region
        %s283 = ssub.s32 %s13, 2
        // Predicated region
        $region37: #{tpu_custom_call.1} parent=35 // pred_check
          %p284 = pneg %p110
        $region38: #{tpu_custom_call.1} parent=35 // pred_check_branch
          %286 = sbr.rel (%p284) target = $region40
        $region39: #{tpu_custom_call.1} parent=35 // pred_region
          %s287 = sand.u32 %s95, 1
          %s288 = scalar_lea.sflag [#allocation4], %s287
          %s289 = sand.u32 %s95, 1
          %s290 = smul.addr %s289, 48
          %s291 = scalar_lea.vmem [#allocation5], %s290
          %292 = dma.done %s288, 768
        $region40: #{tpu_custom_call.1} parent=35 // pred_fallthru
          _
      $region36: #{tpu_custom_call.1} parent=5 // pred_fallthru
        _
    $region6: #{tpu_custom_call.1} parent=1 // loop_footer
      %s17 = sadd.s32 1, %s13
    $region7: #{tpu_custom_call.1} parent=1 // loop_footer_branch
      %12 = sbr.rel target = $region3
    $region8: #{tpu_custom_call.1} parent=1 // loop_exit
      _
    %293 = vsyncpa [#allocation3], 1
    %s294 = scalar_lea.sflag [#allocation3], 1
    %295 = vsyncpa %s294, 1
    %296 = vsyncpa [#allocation4], 1
    %s297 = scalar_lea.sflag [#allocation4], 1
    %298 = vsyncpa %s297, 1

</llo_original>
